<compile_context>
chip_gen: v7x
topology: tpu7x:2x2x1
jax: 0.10.0
libtpu: 0.0.40
codegen_flags: <defaults>
</compile_context>

<pallas_src>
import math

import jax
import jax.numpy as jnp
from jax.experimental import pallas as pl
from jax.experimental.pallas import tpu as pltpu


def _round_up(x, m):
    return ((x + m - 1) // m) * m


def _stamp_kernel(x_ref, w_ref, b_ref, probs_ref, acc_ref):
    """Grid = (batch_tiles [parallel], feature_tiles [arbitrary]).

    x_ref:     (A, bt, tk)   f32   current batch-tile of every view
    w_ref:     (tk, CP)      bf16  classifier weight K-slab (classes padded to 128)
    b_ref:     (1, CP)       f32   bias (padded classes = -1e30)
    probs_ref: (bt, CP)      f32   mean softmax probabilities (lane-dense)
    acc_ref:   (A*bt, CP)    f32   folded per-view logits accumulator (persists over K)
    """
    k = pl.program_id(1)
    nk = pl.num_programs(1)
    num_views, bt, tk = x_ref.shape

    @pl.when(k == 0)
    def _():
        acc_ref[...] = jnp.zeros_like(acc_ref)

    # One MXU push with M = A*bt: fold the views into the M dimension
    # (leading-dim merge is layout-free since bt % 8 == 0, tk % 128 == 0) and
    # cast the f32 stream to bf16 on the VPU right before the dot.
    x2d = x_ref[...].reshape(num_views * bt, tk).astype(jnp.bfloat16)
    acc_ref[...] += jnp.dot(x2d, w_ref[...], preferred_element_type=jnp.float32)

    @pl.when(k == nk - 1)
    def _():
        bias = b_ref[...]                                  # f32, only in finalize
        inv_a = 1.0 / num_views
        # Accumulate per-view probabilities directly into the VMEM-resident
        # output so at most one (bt, CP) temporary is live at a time.
        for a in range(num_views):
            logits = acc_ref[pl.ds(a * bt, bt), :] + bias  # (bt, CP), f32
            m = jnp.max(logits, axis=-1, keepdims=True)
            e = jnp.exp(logits - m)                        # padded classes -> 0
            p = (e / jnp.sum(e, axis=-1, keepdims=True)) * inv_a
            if a == 0:
                probs_ref[...] = p
            else:
                probs_ref[...] += p


def stamp_forward(x_views, weight, bias, *, batch_tile=256, feat_tile=1024,
                  vmem_budget_bytes=24 * 1024 * 1024):
    """x_views: (A, B, C, H, W) f32; weight: (F, C); bias: (C,).

    Returns (mean_probs (B, C), neg_entropy (B,)).
    """
    A, B, C, H, W = x_views.shape
    F = C * H * W
    num_class = weight.shape[1]

    # Lane-dense classes.
    CP = _round_up(num_class, 128)

    # Batch tiling: bound padding waste; when the batch is big enough give the
    # "parallel" batch axis >= 2 tiles so v7x's second TensorCore has work.
    Bp_raw = _round_up(B, 8)
    nb = max(1, pl.cdiv(Bp_raw, batch_tile))
    if nb == 1 and Bp_raw >= 16:
        nb = 2
    bt = _round_up(pl.cdiv(Bp_raw, nb), 8)
    Bp = nb * bt

    # Feature (K) tiling: bound padding waste; start from feat_tile.
    Fp_raw = _round_up(F, 128)
    nk = max(1, pl.cdiv(Fp_raw, feat_tile))
    tk = _round_up(pl.cdiv(Fp_raw, nk), 128)

    def footprint(bt_, tk_):
        x_t = A * bt_ * tk_ * 4        # f32 x tile (double-buffered)
        w_t = tk_ * CP * 2             # bf16 weight tile
        b_t = 8 * CP * 4               # bias tile (sublane-padded)
        o_t = bt_ * CP * 4             # f32 output tile
        acc = A * bt_ * CP * 4         # f32 scratch accumulator
        return 2 * (x_t + w_t + b_t + o_t) + acc

    # Shrink tk first, then bt, until the double-buffered footprint fits the
    # v7x-safe VMEM budget (64 MiB physical / 32 MiB scoped on v7x).
    while footprint(bt, tk) > vmem_budget_bytes and tk > 128:
        tk = max(128, _round_up(tk // 2, 128))
    while footprint(bt, tk) > vmem_budget_bytes and bt > 8:
        bt = max(8, _round_up(bt // 2, 8))
        nb = pl.cdiv(Bp_raw, bt)
        Bp = nb * bt
    Fp = pl.cdiv(Fp_raw, tk) * tk

    # Pad. x stays f32 (no dtype repack: the bf16 cast happens in-kernel);
    # padded classes get a huge negative bias so their softmax prob is exactly
    # zero; padded batch rows / feature columns contribute nothing and are
    # sliced off on the host.
    x_flat = x_views.reshape(A, B, F).astype(jnp.float32)
    if Bp == B and Fp == F:
        x_in = x_flat
    else:
        x_in = jnp.zeros((A, Bp, Fp), jnp.float32).at[:, :B, :F].set(x_flat)
    w_pad = jnp.zeros((Fp, CP), jnp.bfloat16).at[:F, :num_class].set(
        weight.astype(jnp.bfloat16))
    b_pad = jnp.full((1, CP), -1e30, jnp.float32).at[0, :num_class].set(
        bias.astype(jnp.float32))

    grid = (Bp // bt, Fp // tk)
    vmem_limit = int(min(max(2 * footprint(bt, tk), 16 * 1024 * 1024),
                         48 * 1024 * 1024))

    probs_pad = pl.pallas_call(
        _stamp_kernel,
        out_shape=jax.ShapeDtypeStruct((Bp, CP), jnp.float32),
        grid_spec=pltpu.PrefetchScalarGridSpec(
            num_scalar_prefetch=0,
            grid=grid,
            in_specs=[
                pl.BlockSpec((A, bt, tk), lambda j, k: (0, j, k)),
                pl.BlockSpec((tk, CP), lambda j, k: (k, 0)),
                pl.BlockSpec((1, CP), lambda j, k: (0, 0)),
            ],
            out_specs=pl.BlockSpec((bt, CP), lambda j, k: (j, 0)),
            scratch_shapes=[pltpu.VMEM((A * bt, CP), jnp.float32)],
        ),
        compiler_params=pltpu.CompilerParams(
            dimension_semantics=("parallel", "arbitrary"),
            vmem_limit_bytes=vmem_limit,
        ),
    )(x_in, w_pad, b_pad)

    probs = probs_pad[:B, :num_class]
    # forward returns -entropy(p) = sum(p * log(p + 1e-5), dim=1); a trivial
    # O(B*C) reduction left to XLA on the already-sliced probs (removes a
    # second full (Bp, CP) kernel output / writeback).
    neg_ent = jnp.sum(probs * jnp.log(probs + 1e-5), axis=-1)
    return probs, neg_ent


def stamp_forward_ref(x_views, weight, bias):
    """Pure-JAX reference with the same precision policy (bf16 matmul, f32 rest)."""
    A, B, C, H, W = x_views.shape
    x_flat = x_views.reshape(A, B, -1).astype(jnp.bfloat16)
    w = weight.astype(jnp.bfloat16)
    logits = jnp.einsum("abf,fc->abc", x_flat, w,
                        preferred_element_type=jnp.float32) + bias[None, None, :]
    probs = jax.nn.softmax(logits, axis=-1)
    mean_p = jnp.mean(probs, axis=0)
    neg_ent = jnp.sum(mean_p * jnp.log(mean_p + 1e-5), axis=-1)
    return mean_p, neg_ent


# TODO(synk): RBM memory updates (torch.where filtering + python-list buffer,
# random.choice eviction) and the SAM first_step/second_step adapt() loop with
# a cosine LR scheduler are stateful host-side logic with no clean Pallas
# equivalent; only the forward scoring path is kernelized.

if __name__ == "__main__":
    key = jax.random.PRNGKey(0)
    kx, kw, kb = jax.random.split(key, 3)

    # Small shapes implied by the forward: A augmented views of an NCHW batch.
    A, B, C, H, W = 3, 2, 4, 16, 16
    num_class = 10
    alpha = 0.4
    margin = alpha * math.log(num_class)  # STAMP's memory-filter threshold (host-side)

    F = C * H * W
    x = jax.random.normal(kx, (A, B, C, H, W), dtype=jnp.float32)
    weight = jax.random.normal(kw, (F, num_class), dtype=jnp.float32) * 0.02
    bias = jax.random.normal(kb, (num_class,), dtype=jnp.float32) * 0.01

    out, neg_ent = stamp_forward(x, weight, bias)
    jax.block_until_ready((out, neg_ent))

    out_ref, neg_ent_ref = stamp_forward_ref(x, weight, bias)
    assert out.shape == (B, num_class) and neg_ent.shape == (B,)
    assert jnp.allclose(out, out_ref, atol=1e-4, rtol=1e-3)
    assert jnp.allclose(neg_ent, neg_ent_ref, atol=1e-4, rtol=1e-3)

    print("KERNEL_OK")
</pallas_src>

<mosaic_0001>
module attributes {stable_mosaic.version = 11 : i64} {
  func.func @_stamp_kernel(%arg0: i32, %arg1: i32, %arg2: memref<3x8x1024xf32, #tpu.memory_space<vmem>>, %arg3: memref<1024x128xbf16, #tpu.memory_space<vmem>>, %arg4: memref<1x128xf32, #tpu.memory_space<vmem>>, %arg5: memref<8x128xf32, #tpu.memory_space<vmem>>, %arg6: memref<24x128xf32, #tpu.memory_space<vmem>>) attributes {dimension_semantics = [#tpu.dimension_semantics<parallel>, #tpu.dimension_semantics<arbitrary>], iteration_bounds = array<i64: 1, 1>, scalar_prefetch = 0 : i64, scratch_operands = 1 : i64, tpu.core_type = #tpu.core_type<tc>, window_params = [{transform_indices = @transform_0, window_bounds = array<i64: 3, 8, 1024>}, {transform_indices = @transform_1, window_bounds = array<i64: 1024, 128>}, {pipeline_mode = #tpu.pipeline_mode<synchronous>, transform_indices = @transform_2, window_bounds = array<i64: 1, 128>}, {transform_indices = @transform_3, window_bounds = array<i64: 8, 128>}]} {
    %c0_i32 = arith.constant 0 : i32
    %0 = arith.cmpi eq, %arg1, %c0_i32 : i32
    %1 = arith.extui %0 : i1 to i32
    %c0_i32_0 = arith.constant 0 : i32
    %2 = arith.cmpi ne, %1, %c0_i32_0 : i32
    scf.if %2 {
      %cst_11 = arith.constant 0.000000e+00 : f32
      %14 = vector.broadcast %cst_11 : f32 to vector<24x128xf32>
      %c0_12 = arith.constant 0 : index
      %c0_13 = arith.constant 0 : index
      %15 = vector.load %arg6[%c0_12, %c0_13] : memref<24x128xf32, #tpu.memory_space<vmem>>, vector<24x128xf32>
      tpu.vector_store %arg6[%c0_12, %c0_13], %14 {strides = array<i32>} : memref<24x128xf32, #tpu.memory_space<vmem>>, vector<24x128xf32>,
    } else {
    }
    %c0 = arith.constant 0 : index
    %c0_1 = arith.constant 0 : index
    %c0_2 = arith.constant 0 : index
    %3 = vector.load %arg2[%c0, %c0_1, %c0_2] : memref<3x8x1024xf32, #tpu.memory_space<vmem>>, vector<3x8x1024xf32>
    %4 = vector.shape_cast %3 : vector<3x8x1024xf32> to vector<24x1024xf32>
    %5 = arith.truncf %4 : vector<24x1024xf32> to vector<24x1024xbf16>
    %c0_3 = arith.constant 0 : index
    %c0_4 = arith.constant 0 : index
    %6 = vector.load %arg6[%c0_3, %c0_4] : memref<24x128xf32, #tpu.memory_space<vmem>>, vector<24x128xf32>
    %c0_5 = arith.constant 0 : index
    %c0_6 = arith.constant 0 : index
    %7 = vector.load %arg3[%c0_5, %c0_6] : memref<1024x128xbf16, #tpu.memory_space<vmem>>, vector<1024x128xbf16>
    %cst = arith.constant dense<0.000000e+00> : vector<24x128xf32>
    %8 = tpu.matmul %5, %7, %cst {dimension_numbers = #tpu.dot_dimension_numbers<[1], [0], [0], [1], [0, 0, 1, 1], [], []>} : vector<24x1024xbf16>, vector<1024x128xbf16>, vector<24x128xf32> -> vector<24x128xf32>
    %9 = arith.addf %6, %8 : vector<24x128xf32>
    %c0_7 = arith.constant 0 : index
    %c0_8 = arith.constant 0 : index
    %10 = vector.load %arg6[%c0_7, %c0_8] : memref<24x128xf32, #tpu.memory_space<vmem>>, vector<24x128xf32>
    tpu.vector_store %arg6[%c0_7, %c0_8], %9 {strides = array<i32>} : memref<24x128xf32, #tpu.memory_space<vmem>>, vector<24x128xf32>,
    %c0_i32_9 = arith.constant 0 : i32
    %11 = arith.cmpi eq, %arg1, %c0_i32_9 : i32
    %12 = arith.extui %11 : i1 to i32
    %c0_i32_10 = arith.constant 0 : i32
    %13 = arith.cmpi ne, %12, %c0_i32_10 : i32
    scf.if %13 {
      %c0_11 = arith.constant 0 : index
      %c0_12 = arith.constant 0 : index
      %14 = vector.load %arg4[%c0_11, %c0_12] : memref<1x128xf32, #tpu.memory_space<vmem>>, vector<1x128xf32>
      %c0_13 = arith.constant 0 : index
      %c0_14 = arith.constant 0 : index
      %15 = vector.load %arg6[%c0_13, %c0_14] : memref<24x128xf32, #tpu.memory_space<vmem>>, vector<8x128xf32>
      %16 = vector.broadcast %14 : vector<1x128xf32> to vector<8x128xf32>
      %17 = arith.addf %15, %16 : vector<8x128xf32>
      %cst_15 = arith.constant dense<0xFF800000> : vector<8xf32>
      %18 = vector.multi_reduction <maximumf>, %17, %cst_15 [1] : vector<8x128xf32> to vector<8xf32>
      %19 = vector.shape_cast %18 : vector<8xf32> to vector<8x1xf32>
      %20 = vector.broadcast %19 : vector<8x1xf32> to vector<8x128xf32>
      %21 = arith.subf %17, %20 : vector<8x128xf32>
      %22 = math.exp %21 : vector<8x128xf32>
      %cst_16 = arith.constant dense<0.000000e+00> : vector<8xf32>
      %23 = vector.multi_reduction <add>, %22, %cst_16 [1] : vector<8x128xf32> to vector<8xf32>
      %24 = vector.shape_cast %23 : vector<8xf32> to vector<8x1xf32>
      %25 = vector.broadcast %24 : vector<8x1xf32> to vector<8x128xf32>
      %26 = arith.divf %22, %25 : vector<8x128xf32>
      %cst_17 = arith.constant 0.333333343 : f32
      %27 = vector.broadcast %cst_17 : f32 to vector<8x128xf32>
      %28 = arith.mulf %26, %27 : vector<8x128xf32>
      %c0_18 = arith.constant 0 : index
      %c0_19 = arith.constant 0 : index
      %29 = vector.load %arg5[%c0_18, %c0_19] : memref<8x128xf32, #tpu.memory_space<vmem>>, vector<8x128xf32>
      tpu.vector_store %arg5[%c0_18, %c0_19], %28 {strides = array<i32>} : memref<8x128xf32, #tpu.memory_space<vmem>>, vector<8x128xf32>,
      %c8 = arith.constant 8 : index
      %c0_20 = arith.constant 0 : index
      %30 = vector.load %arg6[%c8, %c0_20] : memref<24x128xf32, #tpu.memory_space<vmem>>, vector<8x128xf32>
      %31 = vector.broadcast %14 : vector<1x128xf32> to vector<8x128xf32>
      %32 = arith.addf %30, %31 : vector<8x128xf32>
      %cst_21 = arith.constant dense<0xFF800000> : vector<8xf32>
      %33 = vector.multi_reduction <maximumf>, %32, %cst_21 [1] : vector<8x128xf32> to vector<8xf32>
      %34 = vector.shape_cast %33 : vector<8xf32> to vector<8x1xf32>
      %35 = vector.broadcast %34 : vector<8x1xf32> to vector<8x128xf32>
      %36 = arith.subf %32, %35 : vector<8x128xf32>
      %37 = math.exp %36 : vector<8x128xf32>
      %cst_22 = arith.constant dense<0.000000e+00> : vector<8xf32>
      %38 = vector.multi_reduction <add>, %37, %cst_22 [1] : vector<8x128xf32> to vector<8xf32>
      %39 = vector.shape_cast %38 : vector<8xf32> to vector<8x1xf32>
      %40 = vector.broadcast %39 : vector<8x1xf32> to vector<8x128xf32>
      %41 = arith.divf %37, %40 : vector<8x128xf32>
      %cst_23 = arith.constant 0.333333343 : f32
      %42 = vector.broadcast %cst_23 : f32 to vector<8x128xf32>
      %43 = arith.mulf %41, %42 : vector<8x128xf32>
      %c0_24 = arith.constant 0 : index
      %c0_25 = arith.constant 0 : index
      %44 = vector.load %arg5[%c0_24, %c0_25] : memref<8x128xf32, #tpu.memory_space<vmem>>, vector<8x128xf32>
      %45 = arith.addf %44, %43 : vector<8x128xf32>
      %c0_26 = arith.constant 0 : index
      %c0_27 = arith.constant 0 : index
      %46 = vector.load %arg5[%c0_26, %c0_27] : memref<8x128xf32, #tpu.memory_space<vmem>>, vector<8x128xf32>
      tpu.vector_store %arg5[%c0_26, %c0_27], %45 {strides = array<i32>} : memref<8x128xf32, #tpu.memory_space<vmem>>, vector<8x128xf32>,
      %c16 = arith.constant 16 : index
      %c0_28 = arith.constant 0 : index
      %47 = vector.load %arg6[%c16, %c0_28] : memref<24x128xf32, #tpu.memory_space<vmem>>, vector<8x128xf32>
      %48 = vector.broadcast %14 : vector<1x128xf32> to vector<8x128xf32>
      %49 = arith.addf %47, %48 : vector<8x128xf32>
      %cst_29 = arith.constant dense<0xFF800000> : vector<8xf32>
      %50 = vector.multi_reduction <maximumf>, %49, %cst_29 [1] : vector<8x128xf32> to vector<8xf32>
      %51 = vector.shape_cast %50 : vector<8xf32> to vector<8x1xf32>
      %52 = vector.broadcast %51 : vector<8x1xf32> to vector<8x128xf32>
      %53 = arith.subf %49, %52 : vector<8x128xf32>
      %54 = math.exp %53 : vector<8x128xf32>
      %cst_30 = arith.constant dense<0.000000e+00> : vector<8xf32>
      %55 = vector.multi_reduction <add>, %54, %cst_30 [1] : vector<8x128xf32> to vector<8xf32>
      %56 = vector.shape_cast %55 : vector<8xf32> to vector<8x1xf32>
      %57 = vector.broadcast %56 : vector<8x1xf32> to vector<8x128xf32>
      %58 = arith.divf %54, %57 : vector<8x128xf32>
      %cst_31 = arith.constant 0.333333343 : f32
      %59 = vector.broadcast %cst_31 : f32 to vector<8x128xf32>
      %60 = arith.mulf %58, %59 : vector<8x128xf32>
      %c0_32 = arith.constant 0 : index
      %c0_33 = arith.constant 0 : index
      %61 = vector.load %arg5[%c0_32, %c0_33] : memref<8x128xf32, #tpu.memory_space<vmem>>, vector<8x128xf32>
      %62 = arith.addf %61, %60 : vector<8x128xf32>
      %c0_34 = arith.constant 0 : index
      %c0_35 = arith.constant 0 : index
      %63 = vector.load %arg5[%c0_34, %c0_35] : memref<8x128xf32, #tpu.memory_space<vmem>>, vector<8x128xf32>
      tpu.vector_store %arg5[%c0_34, %c0_35], %62 {strides = array<i32>} : memref<8x128xf32, #tpu.memory_space<vmem>>, vector<8x128xf32>,
    } else {
    }
    return
  }
  func.func @transform_0(%arg0: i32, %arg1: i32) -> (i32, i32, i32) {
    %c0_i32 = arith.constant 0 : i32
    %c0_i32_0 = arith.constant 0 : i32
    return %c0_i32, %arg0, %arg1 : i32, i32, i32
  }
  func.func @transform_1(%arg0: i32, %arg1: i32) -> (i32, i32) {
    %c0_i32 = arith.constant 0 : i32
    %c0_i32_0 = arith.constant 0 : i32
    return %arg1, %c0_i32 : i32, i32
  }
  func.func @transform_2(%arg0: i32, %arg1: i32) -> (i32, i32) {
    %c0_i32 = arith.constant 0 : i32
    %c0_i32_0 = arith.constant 0 : i32
    %c0_i32_1 = arith.constant 0 : i32
    return %c0_i32, %c0_i32_0 : i32, i32
  }
  func.func @transform_3(%arg0: i32, %arg1: i32) -> (i32, i32) {
    %c0_i32 = arith.constant 0 : i32
    %c0_i32_0 = arith.constant 0 : i32
    return %arg0, %c0_i32 : i32, i32
  }
}

</mosaic_0001>

<llo_original>
// kernel: tpu_custom_call.1
$region0: #{tpu_custom_call.1}
  #allocation0 [shape = 'u32[]', space=smem, size = 0x4, offset = 0x4, fixed_abs, tag = 'smem constant byte address 0x4 - core index']
  #allocation1 [shape = 'u32[144,128]{1,0:T(1,128)}', space=vmem, size = 0x12000, scoped, tag = 'internal scratch']
  #allocation2 [shape = 'f32[24,128]{1,0:T(8,128)}', space=vmem, size = 0x3000, scoped, tag = 'scratch operand']
  %s0 = inlined_call_operand.hbm [shape: f32[3,8,1024], index: 0, kind: input, shape index: {}]
  %s1 = inlined_call_operand.hbm [shape: bf16[1024,128], index: 1, kind: input, shape index: {}]
  %s2 = inlined_call_operand.vmem [shape: f32[1,128], index: 2, kind: input, shape index: {}]
  %s3 = inlined_call_operand.hbm [shape: f32[8,128], index: 3, kind: output, shape index: {}]
  %s4 = sld [smem:[#allocation0]]
  $region38: #{tpu_custom_call.1} parent=0
    _
  %s6 = ssub.s32 1, %s4
  %s7 = scalar_select 0, %s6, %s4
  $region1: #{tpu_custom_call.1} parent=0
    #allocation3 [shape = 'u8[98304]{0}', space=vmem, size = 0x18000, scoped, tag = 'input window, operand 0, single buffered']
    #allocation4 [shape = 's32[1]{0}', space=sflag, size = 0x4, scoped, tag = 'scoped memory for tpu_custom_call.1']
    #allocation5 [shape = 's32[1]{0}', space=sflag, size = 0x4, scoped, tag = 'scoped memory for tpu_custom_call.1']
    #allocation6 [shape = 'u8[262144]{0}', space=vmem, size = 0x40000, scoped, tag = 'input window, operand 1, single buffered']
    #allocation7 [shape = 's32[1]{0}', space=sflag, size = 0x4, scoped, tag = 'scoped memory for tpu_custom_call.1']
    #allocation8 [shape = 'u8[4096]{0}', space=vmem, size = 0x1000, scoped, tag = 'output window, operand 0, single buffered']
    %8 = vsyncpa [#allocation4], 0
    %9 = vsyncpa [#allocation7], 0
    %10 = vsyncpa [#allocation5], 0
    // Predicated region
    $region2: #{tpu_custom_call.1} parent=1 // pred_check
      _
    $region3: #{tpu_custom_call.1} parent=1 // pred_check_branch
      %12 = sbr.rel (0) target = $region5
    $region4: #{tpu_custom_call.1} parent=1 // pred_region
      %s14 = ssub.s32 3072, 3072
      %15 = vsyncadd [#allocation4], %s14
      %s16 = sshll.u32 [#allocation3], 4
      %s17 = int_to_ptr.vmem [resolvable:$true] %s16
      %22 = dma.hbm_to_vmem [thread:$0]  %s0, 3072, %s17, [#allocation4], 1024, 1024, 64
    $region5: #{tpu_custom_call.1} parent=1 // pred_fallthru
      _
    // Predicated region
    $region6: #{tpu_custom_call.1} parent=1 // pred_check
      _
    $region7: #{tpu_custom_call.1} parent=1 // pred_check_branch
      %24 = sbr.rel (0) target = $region9
    $region8: #{tpu_custom_call.1} parent=1 // pred_region
      %s26 = ssub.s32 8192, 8192
      %27 = vsyncadd [#allocation7], %s26
      %s28 = sshll.u32 [#allocation6], 4
      %s29 = int_to_ptr.vmem [resolvable:$true] %s28
      %34 = dma.hbm_to_vmem [thread:$0]  %s1, 8192, %s29, [#allocation7], 64, 64, 4
    $region9: #{tpu_custom_call.1} parent=1 // pred_fallthru
      _
    // Predicated region
    $region10: #{tpu_custom_call.1} parent=1 // pred_check
      _
    $region11: #{tpu_custom_call.1} parent=1 // pred_check_branch
      %36 = sbr.rel (0) target = $region13
    $region12: #{tpu_custom_call.1} parent=1 // pred_region
      _
    $region13: #{tpu_custom_call.1} parent=1 // pred_fallthru
      _
    // Predicated region
    $region14: #{tpu_custom_call.1} parent=1 // pred_check
      _
    $region15: #{tpu_custom_call.1} parent=1 // pred_check_branch
      %38 = sbr.rel (0) target = $region17
    $region16: #{tpu_custom_call.1} parent=1 // pred_region
      %39 = dma.done [#allocation4], 3072
    $region17: #{tpu_custom_call.1} parent=1 // pred_fallthru
      _
    // Predicated region
    $region18: #{tpu_custom_call.1} parent=1 // pred_check
      _
    $region19: #{tpu_custom_call.1} parent=1 // pred_check_branch
      %41 = sbr.rel (0) target = $region21
    $region20: #{tpu_custom_call.1} parent=1 // pred_region
      %42 = dma.done [#allocation7], 8192
    $region21: #{tpu_custom_call.1} parent=1 // pred_fallthru
      _
    %p44 = scmp.eq.s32.totalorder 0, 0
    // Predicated region
    $region22: #{tpu_custom_call.1} parent=1 // pred_check
      %p45 = pneg %p44
    $region23: #{tpu_custom_call.1} parent=1 // pred_check_branch
      %47 = sbr.rel (%p45) target = $region25
    $region24: #{tpu_custom_call.1} parent=1 // pred_region
      %48 = vst [vmem:[#allocation2] sm:$0xff] 0.0
      %49 = vst [vmem:[#allocation2 + $0x8] sm:$0xff] 0.0
      %50 = vst [vmem:[#allocation2 + $0x10] sm:$0xff] 0.0
    $region25: #{tpu_custom_call.1} parent=1 // pred_fallthru
      _
    %v51 = vld [vmem:[#allocation3] sm:$0xff]
    %v52 = vld [vmem:[#allocation3 + $0x8] sm:$0xff]
    %v53 = vld [vmem:[#allocation3 + $0x10] sm:$0xff]
    %v54 = vld [vmem:[#allocation3 + $0x18] sm:$0xff]
    %v55 = vld [vmem:[#allocation3 + $0x20] sm:$0xff]
    %v56 = vld [vmem:[#allocation3 + $0x28] sm:$0xff]
    %v57 = vld [vmem:[#allocation3 + $0x30] sm:$0xff]
    %v58 = vld [vmem:[#allocation3 + $0x38] sm:$0xff]
    %v59 = vld [vmem:[#allocation3 + $0x40] sm:$0xff]
    %v60 = vld [vmem:[#allocation3 + $0x48] sm:$0xff]
    %v61 = vld [vmem:[#allocation3 + $0x50] sm:$0xff]
    %v62 = vld [vmem:[#allocation3 + $0x58] sm:$0xff]
    %v63 = vld [vmem:[#allocation3 + $0x60] sm:$0xff]
    %v64 = vld [vmem:[#allocation3 + $0x68] sm:$0xff]
    %v65 = vld [vmem:[#allocation3 + $0x70] sm:$0xff]
    %v66 = vld [vmem:[#allocation3 + $0x78] sm:$0xff]
    %v67 = vld [vmem:[#allocation3 + $0x80] sm:$0xff]
    %v68 = vld [vmem:[#allocation3 + $0x88] sm:$0xff]
    %v69 = vld [vmem:[#allocation3 + $0x90] sm:$0xff]
    %v70 = vld [vmem:[#allocation3 + $0x98] sm:$0xff]
    %v71 = vld [vmem:[#allocation3 + $0xa0] sm:$0xff]
    %v72 = vld [vmem:[#allocation3 + $0xa8] sm:$0xff]
    %v73 = vld [vmem:[#allocation3 + $0xb0] sm:$0xff]
    %v74 = vld [vmem:[#allocation3 + $0xb8] sm:$0xff]
    %v75 = vpack.c.bf16 %v59, %v51
    %v76 = vpack.c.bf16 %v60, %v52
    %v77 = vpack.c.bf16 %v61, %v53
    %v78 = vpack.c.bf16 %v62, %v54
    %v79 = vpack.c.bf16 %v63, %v55
    %v80 = vpack.c.bf16 %v64, %v56
    %v81 = vpack.c.bf16 %v65, %v57
    %v82 = vpack.c.bf16 %v66, %v58
    %v83 = vpack.c.bf16 %v67, %v67
    %v84 = vpack.c.bf16 %v68, %v68
    %v85 = vpack.c.bf16 %v69, %v69
    %v86 = vpack.c.bf16 %v70, %v70
    %v87 = vpack.c.bf16 %v71, %v71
    %v88 = vpack.c.bf16 %v72, %v72
    %v89 = vpack.c.bf16 %v73, %v73
    %v90 = vpack.c.bf16 %v74, %v74
    %v91 = vld [vmem:[#allocation2] sm:$0xff]
    %v92 = vld [vmem:[#allocation2 + $0x8] sm:$0xff]
    %v93 = vld [vmem:[#allocation2 + $0x10] sm:$0xff]
    %v94 = vld [vmem:[#allocation6] sm:$0xf]
    %v95 = vld [vmem:[#allocation6 + $0x4] sm:$0xf]
    %v96 = vld [vmem:[#allocation6 + $0x8] sm:$0xf]
    %v97 = vld [vmem:[#allocation6 + $0xc] sm:$0xf]
    %v98 = vld [vmem:[#allocation6 + $0x10] sm:$0xf]
    %v99 = vld [vmem:[#allocation6 + $0x14] sm:$0xf]
    %v100 = vld [vmem:[#allocation6 + $0x18] sm:$0xf]
    %v101 = vld [vmem:[#allocation6 + $0x1c] sm:$0xf]
    %v102 = vld [vmem:[#allocation6 + $0x20] sm:$0xf]
    %v103 = vld [vmem:[#allocation6 + $0x24] sm:$0xf]
    %v104 = vld [vmem:[#allocation6 + $0x28] sm:$0xf]
    %v105 = vld [vmem:[#allocation6 + $0x2c] sm:$0xf]
    %v106 = vld [vmem:[#allocation6 + $0x30] sm:$0xf]
    %v107 = vld [vmem:[#allocation6 + $0x34] sm:$0xf]
    %v108 = vld [vmem:[#allocation6 + $0x38] sm:$0xf]
    %v109 = vld [vmem:[#allocation6 + $0x3c] sm:$0xf]
    %v110 = vld [vmem:[#allocation6 + $0x40] sm:$0xf]
    %v111 = vld [vmem:[#allocation6 + $0x44] sm:$0xf]
    %v112 = vld [vmem:[#allocation6 + $0x48] sm:$0xf]
    %v113 = vld [vmem:[#allocation6 + $0x4c] sm:$0xf]
    %v114 = vld [vmem:[#allocation6 + $0x50] sm:$0xf]
    %v115 = vld [vmem:[#allocation6 + $0x54] sm:$0xf]
    %v116 = vld [vmem:[#allocation6 + $0x58] sm:$0xf]
    %v117 = vld [vmem:[#allocation6 + $0x5c] sm:$0xf]
    %v118 = vld [vmem:[#allocation6 + $0x60] sm:$0xf]
    %v119 = vld [vmem:[#allocation6 + $0x64] sm:$0xf]
    %v120 = vld [vmem:[#allocation6 + $0x68] sm:$0xf]
    %v121 = vld [vmem:[#allocation6 + $0x6c] sm:$0xf]
    %v122 = vld [vmem:[#allocation6 + $0x70] sm:$0xf]
    %v123 = vld [vmem:[#allocation6 + $0x74] sm:$0xf]
    %v124 = vld [vmem:[#allocation6 + $0x78] sm:$0xf]
    %v125 = vld [vmem:[#allocation6 + $0x7c] sm:$0xf]
    %v126 = vld [vmem:[#allocation6 + $0x80] sm:$0xf]
    %v127 = vld [vmem:[#allocation6 + $0x84] sm:$0xf]
    %v128 = vld [vmem:[#allocation6 + $0x88] sm:$0xf]
    %v129 = vld [vmem:[#allocation6 + $0x8c] sm:$0xf]
    %v130 = vld [vmem:[#allocation6 + $0x90] sm:$0xf]
    %v131 = vld [vmem:[#allocation6 + $0x94] sm:$0xf]
    %v132 = vld [vmem:[#allocation6 + $0x98] sm:$0xf]
    %v133 = vld [vmem:[#allocation6 + $0x9c] sm:$0xf]
    %v134 = vld [vmem:[#allocation6 + $0xa0] sm:$0xf]
    %v135 = vld [vmem:[#allocation6 + $0xa4] sm:$0xf]
    %v136 = vld [vmem:[#allocation6 + $0xa8] sm:$0xf]
    %v137 = vld [vmem:[#allocation6 + $0xac] sm:$0xf]
    %v138 = vld [vmem:[#allocation6 + $0xb0] sm:$0xf]
    %v139 = vld [vmem:[#allocation6 + $0xb4] sm:$0xf]
    %v140 = vld [vmem:[#allocation6 + $0xb8] sm:$0xf]
    %v141 = vld [vmem:[#allocation6 + $0xbc] sm:$0xf]
    %v142 = vld [vmem:[#allocation6 + $0xc0] sm:$0xf]
    %v143 = vld [vmem:[#allocation6 + $0xc4] sm:$0xf]
    %v144 = vld [vmem:[#allocation6 + $0xc8] sm:$0xf]
    %v145 = vld [vmem:[#allocation6 + $0xcc] sm:$0xf]
    %v146 = vld [vmem:[#allocation6 + $0xd0] sm:$0xf]
    %v147 = vld [vmem:[#allocation6 + $0xd4] sm:$0xf]
    %v148 = vld [vmem:[#allocation6 + $0xd8] sm:$0xf]
    %v149 = vld [vmem:[#allocation6 + $0xdc] sm:$0xf]
    %v150 = vld [vmem:[#allocation6 + $0xe0] sm:$0xf]
    %v151 = vld [vmem:[#allocation6 + $0xe4] sm:$0xf]
    %v152 = vld [vmem:[#allocation6 + $0xe8] sm:$0xf]
    %v153 = vld [vmem:[#allocation6 + $0xec] sm:$0xf]
    %v154 = vld [vmem:[#allocation6 + $0xf0] sm:$0xf]
    %v155 = vld [vmem:[#allocation6 + $0xf4] sm:$0xf]
    %v156 = vld [vmem:[#allocation6 + $0xf8] sm:$0xf]
    %v157 = vld [vmem:[#allocation6 + $0xfc] sm:$0xf]
    %v158 = vld [vmem:[#allocation6 + $0x100] sm:$0xf]
    %v159 = vld [vmem:[#allocation6 + $0x104] sm:$0xf]
    %v160 = vld [vmem:[#allocation6 + $0x108] sm:$0xf]
    %v161 = vld [vmem:[#allocation6 + $0x10c] sm:$0xf]
    %v162 = vld [vmem:[#allocation6 + $0x110] sm:$0xf]
    %v163 = vld [vmem:[#allocation6 + $0x114] sm:$0xf]
    %v164 = vld [vmem:[#allocation6 + $0x118] sm:$0xf]
    %v165 = vld [vmem:[#allocation6 + $0x11c] sm:$0xf]
    %v166 = vld [vmem:[#allocation6 + $0x120] sm:$0xf]
    %v167 = vld [vmem:[#allocation6 + $0x124] sm:$0xf]
    %v168 = vld [vmem:[#allocation6 + $0x128] sm:$0xf]
    %v169 = vld [vmem:[#allocation6 + $0x12c] sm:$0xf]
    %v170 = vld [vmem:[#allocation6 + $0x130] sm:$0xf]
    %v171 = vld [vmem:[#allocation6 + $0x134] sm:$0xf]
    %v172 = vld [vmem:[#allocation6 + $0x138] sm:$0xf]
    %v173 = vld [vmem:[#allocation6 + $0x13c] sm:$0xf]
    %v174 = vld [vmem:[#allocation6 + $0x140] sm:$0xf]
    %v175 = vld [vmem:[#allocation6 + $0x144] sm:$0xf]
    %v176 = vld [vmem:[#allocation6 + $0x148] sm:$0xf]
    %v177 = vld [vmem:[#allocation6 + $0x14c] sm:$0xf]
    %v178 = vld [vmem:[#allocation6 + $0x150] sm:$0xf]
    %v179 = vld [vmem:[#allocation6 + $0x154] sm:$0xf]
    %v180 = vld [vmem:[#allocation6 + $0x158] sm:$0xf]
    %v181 = vld [vmem:[#allocation6 + $0x15c] sm:$0xf]
    %v182 = vld [vmem:[#allocation6 + $0x160] sm:$0xf]
    %v183 = vld [vmem:[#allocation6 + $0x164] sm:$0xf]
    %v184 = vld [vmem:[#allocation6 + $0x168] sm:$0xf]
    %v185 = vld [vmem:[#allocation6 + $0x16c] sm:$0xf]
    %v186 = vld [vmem:[#allocation6 + $0x170] sm:$0xf]
    %v187 = vld [vmem:[#allocation6 + $0x174] sm:$0xf]
    %v188 = vld [vmem:[#allocation6 + $0x178] sm:$0xf]
    %v189 = vld [vmem:[#allocation6 + $0x17c] sm:$0xf]
    %v190 = vld [vmem:[#allocation6 + $0x180] sm:$0xf]
    %v191 = vld [vmem:[#allocation6 + $0x184] sm:$0xf]
    %v192 = vld [vmem:[#allocation6 + $0x188] sm:$0xf]
    %v193 = vld [vmem:[#allocation6 + $0x18c] sm:$0xf]
    %v194 = vld [vmem:[#allocation6 + $0x190] sm:$0xf]
    %v195 = vld [vmem:[#allocation6 + $0x194] sm:$0xf]
    %v196 = vld [vmem:[#allocation6 + $0x198] sm:$0xf]
    %v197 = vld [vmem:[#allocation6 + $0x19c] sm:$0xf]
    %v198 = vld [vmem:[#allocation6 + $0x1a0] sm:$0xf]
    %v199 = vld [vmem:[#allocation6 + $0x1a4] sm:$0xf]
    %v200 = vld [vmem:[#allocation6 + $0x1a8] sm:$0xf]
    %v201 = vld [vmem:[#allocation6 + $0x1ac] sm:$0xf]
    %v202 = vld [vmem:[#allocation6 + $0x1b0] sm:$0xf]
    %v203 = vld [vmem:[#allocation6 + $0x1b4] sm:$0xf]
    %v204 = vld [vmem:[#allocation6 + $0x1b8] sm:$0xf]
    %v205 = vld [vmem:[#allocation6 + $0x1bc] sm:$0xf]
    %v206 = vld [vmem:[#allocation6 + $0x1c0] sm:$0xf]
    %v207 = vld [vmem:[#allocation6 + $0x1c4] sm:$0xf]
    %v208 = vld [vmem:[#allocation6 + $0x1c8] sm:$0xf]
    %v209 = vld [vmem:[#allocation6 + $0x1cc] sm:$0xf]
    %v210 = vld [vmem:[#allocation6 + $0x1d0] sm:$0xf]
    %v211 = vld [vmem:[#allocation6 + $0x1d4] sm:$0xf]
    %v212 = vld [vmem:[#allocation6 + $0x1d8] sm:$0xf]
    %v213 = vld [vmem:[#allocation6 + $0x1dc] sm:$0xf]
    %v214 = vld [vmem:[#allocation6 + $0x1e0] sm:$0xf]
    %v215 = vld [vmem:[#allocation6 + $0x1e4] sm:$0xf]
    %v216 = vld [vmem:[#allocation6 + $0x1e8] sm:$0xf]
    %v217 = vld [vmem:[#allocation6 + $0x1ec] sm:$0xf]
    %v218 = vld [vmem:[#allocation6 + $0x1f0] sm:$0xf]
    %v219 = vld [vmem:[#allocation6 + $0x1f4] sm:$0xf]
    %v220 = vld [vmem:[#allocation6 + $0x1f8] sm:$0xf]
    %v221 = vld [vmem:[#allocation6 + $0x1fc] sm:$0xf]
    %v350 = vunpack.c.l.b16 %v94
    %v351 = vunpack.c.l.b16 %v95
    %v352 = vunpack.c.l.b16 %v96
    %v353 = vunpack.c.l.b16 %v97
    %v354 = vunpack.c.l.b16 %v98
    %v355 = vunpack.c.l.b16 %v99
    %v356 = vunpack.c.l.b16 %v100
    %v357 = vunpack.c.l.b16 %v101
    %v358 = vunpack.c.l.b16 %v102
    %v359 = vunpack.c.l.b16 %v103
    %v360 = vunpack.c.l.b16 %v104
    %v361 = vunpack.c.l.b16 %v105
    %v362 = vunpack.c.l.b16 %v106
    %v363 = vunpack.c.l.b16 %v107
    %v364 = vunpack.c.l.b16 %v108
    %v365 = vunpack.c.l.b16 %v109
    %v366 = vunpack.c.l.b16 %v110
    %v367 = vunpack.c.l.b16 %v111
    %v368 = vunpack.c.l.b16 %v112
    %v369 = vunpack.c.l.b16 %v113
    %v370 = vunpack.c.l.b16 %v114
    %v371 = vunpack.c.l.b16 %v115
    %v372 = vunpack.c.l.b16 %v116
    %v373 = vunpack.c.l.b16 %v117
    %v374 = vunpack.c.l.b16 %v118
    %v375 = vunpack.c.l.b16 %v119
    %v376 = vunpack.c.l.b16 %v120
    %v377 = vunpack.c.l.b16 %v121
    %v378 = vunpack.c.l.b16 %v122
    %v379 = vunpack.c.l.b16 %v123
    %v380 = vunpack.c.l.b16 %v124
    %v381 = vunpack.c.l.b16 %v125
    %v382 = vunpack.c.l.b16 %v126
    %v383 = vunpack.c.l.b16 %v127
    %v384 = vunpack.c.l.b16 %v128
    %v385 = vunpack.c.l.b16 %v129
    %v386 = vunpack.c.l.b16 %v130
    %v387 = vunpack.c.l.b16 %v131
    %v388 = vunpack.c.l.b16 %v132
    %v389 = vunpack.c.l.b16 %v133
    %v390 = vunpack.c.l.b16 %v134
    %v391 = vunpack.c.l.b16 %v135
    %v392 = vunpack.c.l.b16 %v136
    %v393 = vunpack.c.l.b16 %v137
    %v394 = vunpack.c.l.b16 %v138
    %v395 = vunpack.c.l.b16 %v139
    %v396 = vunpack.c.l.b16 %v140
    %v397 = vunpack.c.l.b16 %v141
    %v398 = vunpack.c.l.b16 %v142
    %v399 = vunpack.c.l.b16 %v143
    %v400 = vunpack.c.l.b16 %v144
    %v401 = vunpack.c.l.b16 %v145
    %v402 = vunpack.c.l.b16 %v146
    %v403 = vunpack.c.l.b16 %v147
    %v404 = vunpack.c.l.b16 %v148
    %v405 = vunpack.c.l.b16 %v149
    %v406 = vunpack.c.l.b16 %v150
    %v407 = vunpack.c.l.b16 %v151
    %v408 = vunpack.c.l.b16 %v152
    %v409 = vunpack.c.l.b16 %v153
    %v410 = vunpack.c.l.b16 %v154
    %v411 = vunpack.c.l.b16 %v155
    %v412 = vunpack.c.l.b16 %v156
    %v413 = vunpack.c.l.b16 %v157
    %v414 = vunpack.c.l.b16 %v158
    %v415 = vunpack.c.l.b16 %v159
    %v416 = vunpack.c.l.b16 %v160
    %v417 = vunpack.c.l.b16 %v161
    %v418 = vunpack.c.l.b16 %v162
    %v419 = vunpack.c.l.b16 %v163
    %v420 = vunpack.c.l.b16 %v164
    %v421 = vunpack.c.l.b16 %v165
    %v422 = vunpack.c.l.b16 %v166
    %v423 = vunpack.c.l.b16 %v167
    %v424 = vunpack.c.l.b16 %v168
    %v425 = vunpack.c.l.b16 %v169
    %v426 = vunpack.c.l.b16 %v170
    %v427 = vunpack.c.l.b16 %v171
    %v428 = vunpack.c.l.b16 %v172
    %v429 = vunpack.c.l.b16 %v173
    %v430 = vunpack.c.l.b16 %v174
    %v431 = vunpack.c.l.b16 %v175
    %v432 = vunpack.c.l.b16 %v176
    %v433 = vunpack.c.l.b16 %v177
    %v434 = vunpack.c.l.b16 %v178
    %v435 = vunpack.c.l.b16 %v179
    %v436 = vunpack.c.l.b16 %v180
    %v437 = vunpack.c.l.b16 %v181
    %v438 = vunpack.c.l.b16 %v182
    %v439 = vunpack.c.l.b16 %v183
    %v440 = vunpack.c.l.b16 %v184
    %v441 = vunpack.c.l.b16 %v185
    %v442 = vunpack.c.l.b16 %v186
    %v443 = vunpack.c.l.b16 %v187
    %v444 = vunpack.c.l.b16 %v188
    %v445 = vunpack.c.l.b16 %v189
    %v446 = vunpack.c.l.b16 %v190
    %v447 = vunpack.c.l.b16 %v191
    %v448 = vunpack.c.l.b16 %v192
    %v449 = vunpack.c.l.b16 %v193
    %v450 = vunpack.c.l.b16 %v194
    %v451 = vunpack.c.l.b16 %v195
    %v452 = vunpack.c.l.b16 %v196
    %v453 = vunpack.c.l.b16 %v197
    %v454 = vunpack.c.l.b16 %v198
    %v455 = vunpack.c.l.b16 %v199
    %v456 = vunpack.c.l.b16 %v200
    %v457 = vunpack.c.l.b16 %v201
    %v458 = vunpack.c.l.b16 %v202
    %v459 = vunpack.c.l.b16 %v203
    %v460 = vunpack.c.l.b16 %v204
    %v461 = vunpack.c.l.b16 %v205
    %v462 = vunpack.c.l.b16 %v206
    %v463 = vunpack.c.l.b16 %v207
    %v464 = vunpack.c.l.b16 %v208
    %v465 = vunpack.c.l.b16 %v209
    %v466 = vunpack.c.l.b16 %v210
    %v467 = vunpack.c.l.b16 %v211
    %v468 = vunpack.c.l.b16 %v212
    %v469 = vunpack.c.l.b16 %v213
    %v470 = vunpack.c.l.b16 %v214
    %v471 = vunpack.c.l.b16 %v215
    %v472 = vunpack.c.l.b16 %v216
    %v473 = vunpack.c.l.b16 %v217
    %v474 = vunpack.c.l.b16 %v218
    %v475 = vunpack.c.l.b16 %v219
    %v476 = vunpack.c.l.b16 %v220
    %v477 = vunpack.c.l.b16 %v221
    %v478 = vpack.c.b16 %v351, %v350
    %v479 = vpack.c.b16 %v353, %v352
    %v480 = vpack.c.b16 %v355, %v354
    %v481 = vpack.c.b16 %v357, %v356
    %v482 = vpack.c.b16 %v359, %v358
    %v483 = vpack.c.b16 %v361, %v360
    %v484 = vpack.c.b16 %v363, %v362
    %v485 = vpack.c.b16 %v365, %v364
    %v486 = vpack.c.b16 %v367, %v366
    %v487 = vpack.c.b16 %v369, %v368
    %v488 = vpack.c.b16 %v371, %v370
    %v489 = vpack.c.b16 %v373, %v372
    %v490 = vpack.c.b16 %v375, %v374
    %v491 = vpack.c.b16 %v377, %v376
    %v492 = vpack.c.b16 %v379, %v378
    %v493 = vpack.c.b16 %v381, %v380
    %v494 = vpack.c.b16 %v383, %v382
    %v495 = vpack.c.b16 %v385, %v384
    %v496 = vpack.c.b16 %v387, %v386
    %v497 = vpack.c.b16 %v389, %v388
    %v498 = vpack.c.b16 %v391, %v390
    %v499 = vpack.c.b16 %v393, %v392
    %v500 = vpack.c.b16 %v395, %v394
    %v501 = vpack.c.b16 %v397, %v396
    %v502 = vpack.c.b16 %v399, %v398
    %v503 = vpack.c.b16 %v401, %v400
    %v504 = vpack.c.b16 %v403, %v402
    %v505 = vpack.c.b16 %v405, %v404
    %v506 = vpack.c.b16 %v407, %v406
    %v507 = vpack.c.b16 %v409, %v408
    %v508 = vpack.c.b16 %v411, %v410
    %v509 = vpack.c.b16 %v413, %v412
    %v510 = vpack.c.b16 %v415, %v414
    %v511 = vpack.c.b16 %v417, %v416
    %v512 = vpack.c.b16 %v419, %v418
    %v513 = vpack.c.b16 %v421, %v420
    %v514 = vpack.c.b16 %v423, %v422
    %v515 = vpack.c.b16 %v425, %v424
    %v516 = vpack.c.b16 %v427, %v426
    %v517 = vpack.c.b16 %v429, %v428
    %v518 = vpack.c.b16 %v431, %v430
    %v519 = vpack.c.b16 %v433, %v432
    %v520 = vpack.c.b16 %v435, %v434
    %v521 = vpack.c.b16 %v437, %v436
    %v522 = vpack.c.b16 %v439, %v438
    %v523 = vpack.c.b16 %v441, %v440
    %v524 = vpack.c.b16 %v443, %v442
    %v525 = vpack.c.b16 %v445, %v444
    %v526 = vpack.c.b16 %v447, %v446
    %v527 = vpack.c.b16 %v449, %v448
    %v528 = vpack.c.b16 %v451, %v450
    %v529 = vpack.c.b16 %v453, %v452
    %v530 = vpack.c.b16 %v455, %v454
    %v531 = vpack.c.b16 %v457, %v456
    %v532 = vpack.c.b16 %v459, %v458
    %v533 = vpack.c.b16 %v461, %v460
    %v534 = vpack.c.b16 %v463, %v462
    %v535 = vpack.c.b16 %v465, %v464
    %v536 = vpack.c.b16 %v467, %v466
    %v537 = vpack.c.b16 %v469, %v468
    %v538 = vpack.c.b16 %v471, %v470
    %v539 = vpack.c.b16 %v473, %v472
    %v540 = vpack.c.b16 %v475, %v474
    %v541 = vpack.c.b16 %v477, %v476
    %606 = vmatprep.subr.bf16.mxu0 0
    %607 = vmatpush1.bf16.msra.mxu0 %v478
    %608 = vmatprep.subr.bf16.mxu0 0
    %609 = vmatpush1.bf16.msra.mxu0 %v479
    %610 = vmatprep.subr.bf16.mxu0 0
    %611 = vmatpush1.bf16.msra.mxu0 %v480
    %612 = vmatprep.subr.bf16.mxu0 0
    %613 = vmatpush1.bf16.msra.mxu0 %v481
    %614 = vmatprep.subr.bf16.mxu0 0
    %615 = vmatpush1.bf16.msra.mxu0 %v482
    %616 = vmatprep.subr.bf16.mxu0 0
    %617 = vmatpush1.bf16.msra.mxu0 %v483
    %618 = vmatprep.subr.bf16.mxu0 0
    %619 = vmatpush1.bf16.msra.mxu0 %v484
    %620 = vmatprep.subr.bf16.mxu0 0
    %621 = vmatpush1.bf16.msra.mxu0 %v485
    %622 = vmatprep.subr.bf16.mxu0 0
    %623 = vmatpush1.bf16.msra.mxu0 %v486
    %624 = vmatprep.subr.bf16.mxu0 0
    %625 = vmatpush1.bf16.msra.mxu0 %v487
    %626 = vmatprep.subr.bf16.mxu0 0
    %627 = vmatpush1.bf16.msra.mxu0 %v488
    %628 = vmatprep.subr.bf16.mxu0 0
    %629 = vmatpush1.bf16.msra.mxu0 %v489
    %630 = vmatprep.subr.bf16.mxu0 0
    %631 = vmatpush1.bf16.msra.mxu0 %v490
    %632 = vmatprep.subr.bf16.mxu0 0
    %633 = vmatpush1.bf16.msra.mxu0 %v491
    %634 = vmatprep.subr.bf16.mxu0 0
    %635 = vmatpush1.bf16.msra.mxu0 %v492
    %636 = vmatprep.subr.bf16.mxu0 0
    %637 = vmatpush1.bf16.msra.mxu0 %v493
    %638 = vmatprep.mubr.bf16.mxu0 %v76
    %639 = vmatmul.mubr.bf16.gmra.mrb[0].mxu0 %v75
    %v640 = vpop.f32.mrb[0].mxu0
    %v641 = vadd.f32 0.0, %v640
    %v642 = vpop.f32.mrb[0].mxu0
    %v643 = vpop.f32.mrb[0].mxu0
    %v644 = vadd.f32 0.0, %v643
    %v645 = vpop.f32.mrb[0].mxu0
    %646 = vmatprep.mubr.bf16.mxu0 %v84
    %647 = vmatmul.mubr.bf16.gmra.mrb[0].mxu0 %v83
    %v648 = vpop.f32.mrb[0].mxu0
    %v649 = vadd.f32 0.0, %v648
    %v650 = vpop.f32.mrb[0].mxu0
    %v651 = vpop.f32.mrb[0].mxu0
    %v652 = vpop.f32.mrb[0].mxu0
    %653 = vdwg.mxu0
    %654 = vmatprep.subr.bf16.mxu0 0
    %655 = vmatpush1.bf16.msra.mxu0 %v494
    %656 = vmatprep.subr.bf16.mxu0 0
    %657 = vmatpush1.bf16.msra.mxu0 %v495
    %658 = vmatprep.subr.bf16.mxu0 0
    %659 = vmatpush1.bf16.msra.mxu0 %v496
    %660 = vmatprep.subr.bf16.mxu0 0
    %661 = vmatpush1.bf16.msra.mxu0 %v497
    %662 = vmatprep.subr.bf16.mxu0 0
    %663 = vmatpush1.bf16.msra.mxu0 %v498
    %664 = vmatprep.subr.bf16.mxu0 0
    %665 = vmatpush1.bf16.msra.mxu0 %v499
    %666 = vmatprep.subr.bf16.mxu0 0
    %667 = vmatpush1.bf16.msra.mxu0 %v500
    %668 = vmatprep.subr.bf16.mxu0 0
    %669 = vmatpush1.bf16.msra.mxu0 %v501
    %670 = vmatprep.subr.bf16.mxu0 0
    %671 = vmatpush1.bf16.msra.mxu0 %v502
    %672 = vmatprep.subr.bf16.mxu0 0
    %673 = vmatpush1.bf16.msra.mxu0 %v503
    %674 = vmatprep.subr.bf16.mxu0 0
    %675 = vmatpush1.bf16.msra.mxu0 %v504
    %676 = vmatprep.subr.bf16.mxu0 0
    %677 = vmatpush1.bf16.msra.mxu0 %v505
    %678 = vmatprep.subr.bf16.mxu0 0
    %679 = vmatpush1.bf16.msra.mxu0 %v506
    %680 = vmatprep.subr.bf16.mxu0 0
    %681 = vmatpush1.bf16.msra.mxu0 %v507
    %682 = vmatprep.subr.bf16.mxu0 0
    %683 = vmatpush1.bf16.msra.mxu0 %v508
    %684 = vmatprep.subr.bf16.mxu0 0
    %685 = vmatpush1.bf16.msra.mxu0 %v509
    %686 = vmatprep.mubr.bf16.mxu0 %v78
    %687 = vmatmul.mubr.bf16.gmra.mrb[0].mxu0 %v77
    %v688 = vpop.f32.mrb[0].mxu0
    %v689 = vadd.f32 %v641, %v688
    %v690 = vpop.f32.mrb[0].mxu0
    %v691 = vpop.f32.mrb[0].mxu0
    %v692 = vadd.f32 %v644, %v691
    %v693 = vpop.f32.mrb[0].mxu0
    %694 = vmatprep.mubr.bf16.mxu0 %v86
    %695 = vmatmul.mubr.bf16.gmra.mrb[0].mxu0 %v85
    %v696 = vpop.f32.mrb[0].mxu0
    %v697 = vadd.f32 %v649, %v696
    %v698 = vpop.f32.mrb[0].mxu0
    %v699 = vpop.f32.mrb[0].mxu0
    %v700 = vpop.f32.mrb[0].mxu0
    %701 = vdwg.mxu0
    %702 = vmatprep.subr.bf16.mxu0 0
    %703 = vmatpush1.bf16.msra.mxu0 %v510
    %704 = vmatprep.subr.bf16.mxu0 0
    %705 = vmatpush1.bf16.msra.mxu0 %v511
    %706 = vmatprep.subr.bf16.mxu0 0
    %707 = vmatpush1.bf16.msra.mxu0 %v512
    %708 = vmatprep.subr.bf16.mxu0 0
    %709 = vmatpush1.bf16.msra.mxu0 %v513
    %710 = vmatprep.subr.bf16.mxu0 0
    %711 = vmatpush1.bf16.msra.mxu0 %v514
    %712 = vmatprep.subr.bf16.mxu0 0
    %713 = vmatpush1.bf16.msra.mxu0 %v515
    %714 = vmatprep.subr.bf16.mxu0 0
    %715 = vmatpush1.bf16.msra.mxu0 %v516
    %716 = vmatprep.subr.bf16.mxu0 0
    %717 = vmatpush1.bf16.msra.mxu0 %v517
    %718 = vmatprep.subr.bf16.mxu0 0
    %719 = vmatpush1.bf16.msra.mxu0 %v518
    %720 = vmatprep.subr.bf16.mxu0 0
    %721 = vmatpush1.bf16.msra.mxu0 %v519
    %722 = vmatprep.subr.bf16.mxu0 0
    %723 = vmatpush1.bf16.msra.mxu0 %v520
    %724 = vmatprep.subr.bf16.mxu0 0
    %725 = vmatpush1.bf16.msra.mxu0 %v521
    %726 = vmatprep.subr.bf16.mxu0 0
    %727 = vmatpush1.bf16.msra.mxu0 %v522
    %728 = vmatprep.subr.bf16.mxu0 0
    %729 = vmatpush1.bf16.msra.mxu0 %v523
    %730 = vmatprep.subr.bf16.mxu0 0
    %731 = vmatpush1.bf16.msra.mxu0 %v524
    %732 = vmatprep.subr.bf16.mxu0 0
    %733 = vmatpush1.bf16.msra.mxu0 %v525
    %734 = vmatprep.mubr.bf16.mxu0 %v80
    %735 = vmatmul.mubr.bf16.gmra.mrb[0].mxu0 %v79
    %v736 = vpop.f32.mrb[0].mxu0
    %v737 = vadd.f32 %v689, %v736
    %v738 = vpop.f32.mrb[0].mxu0
    %v739 = vpop.f32.mrb[0].mxu0
    %v740 = vadd.f32 %v692, %v739
    %v741 = vpop.f32.mrb[0].mxu0
    %742 = vmatprep.mubr.bf16.mxu0 %v88
    %743 = vmatmul.mubr.bf16.gmra.mrb[0].mxu0 %v87
    %v744 = vpop.f32.mrb[0].mxu0
    %v745 = vadd.f32 %v697, %v744
    %v746 = vpop.f32.mrb[0].mxu0
    %v747 = vpop.f32.mrb[0].mxu0
    %v748 = vpop.f32.mrb[0].mxu0
    %749 = vdwg.mxu0
    %750 = vmatprep.subr.bf16.mxu0 0
    %751 = vmatpush1.bf16.msra.mxu0 %v526
    %752 = vmatprep.subr.bf16.mxu0 0
    %753 = vmatpush1.bf16.msra.mxu0 %v527
    %754 = vmatprep.subr.bf16.mxu0 0
    %755 = vmatpush1.bf16.msra.mxu0 %v528
    %756 = vmatprep.subr.bf16.mxu0 0
    %757 = vmatpush1.bf16.msra.mxu0 %v529
    %758 = vmatprep.subr.bf16.mxu0 0
    %759 = vmatpush1.bf16.msra.mxu0 %v530
    %760 = vmatprep.subr.bf16.mxu0 0
    %761 = vmatpush1.bf16.msra.mxu0 %v531
    %762 = vmatprep.subr.bf16.mxu0 0
    %763 = vmatpush1.bf16.msra.mxu0 %v532
    %764 = vmatprep.subr.bf16.mxu0 0
    %765 = vmatpush1.bf16.msra.mxu0 %v533
    %766 = vmatprep.subr.bf16.mxu0 0
    %767 = vmatpush1.bf16.msra.mxu0 %v534
    %768 = vmatprep.subr.bf16.mxu0 0
    %769 = vmatpush1.bf16.msra.mxu0 %v535
    %770 = vmatprep.subr.bf16.mxu0 0
    %771 = vmatpush1.bf16.msra.mxu0 %v536
    %772 = vmatprep.subr.bf16.mxu0 0
    %773 = vmatpush1.bf16.msra.mxu0 %v537
    %774 = vmatprep.subr.bf16.mxu0 0
    %775 = vmatpush1.bf16.msra.mxu0 %v538
    %776 = vmatprep.subr.bf16.mxu0 0
    %777 = vmatpush1.bf16.msra.mxu0 %v539
    %778 = vmatprep.subr.bf16.mxu0 0
    %779 = vmatpush1.bf16.msra.mxu0 %v540
    %780 = vmatprep.subr.bf16.mxu0 0
    %781 = vmatpush1.bf16.msra.mxu0 %v541
    %782 = vmatprep.mubr.bf16.mxu0 %v82
    %783 = vmatmul.mubr.bf16.gmra.mrb[0].mxu0 %v81
    %v784 = vpop.f32.mrb[0].mxu0
    %v785 = vadd.f32 %v737, %v784
    %v786 = vpop.f32.mrb[0].mxu0
    %v787 = vpop.f32.mrb[0].mxu0
    %v788 = vadd.f32 %v740, %v787
    %v789 = vpop.f32.mrb[0].mxu0
    %790 = vmatprep.mubr.bf16.mxu0 %v90
    %791 = vmatmul.mubr.bf16.gmra.mrb[0].mxu0 %v89
    %v792 = vpop.f32.mrb[0].mxu0
    %v793 = vadd.f32 %v745, %v792
    %v794 = vpop.f32.mrb[0].mxu0
    %v795 = vpop.f32.mrb[0].mxu0
    %v796 = vpop.f32.mrb[0].mxu0
    %797 = vdwg.mxu0
    %v798 = vadd.f32 %v91, %v785
    %v799 = vadd.f32 %v92, %v788
    %v800 = vadd.f32 %v93, %v793
    %801 = vst [vmem:[#allocation2] sm:$0xff] %v798
    %802 = vst [vmem:[#allocation2 + $0x8] sm:$0xff] %v799
    %803 = vst [vmem:[#allocation2 + $0x10] sm:$0xff] %v800
    // Predicated region
    $region26: #{tpu_custom_call.1} parent=1 // pred_check
      %p804 = pneg %p44
    $region27: #{tpu_custom_call.1} parent=1 // pred_check_branch
      %806 = sbr.rel (%p804) target = $region29
    $region28: #{tpu_custom_call.1} parent=1 // pred_region
      %v807 = vld [vmem:[%s2] sm:$0x1]
      %v808 = vld [vmem:[#allocation2] sm:$0xff]
      %v810 = vlaneseq
      %v811 = vshrl.u32 %v810, 7
      %v812 = vsub.s32 0, %v811
      %v813 = vrot.slane %v807, %v812
      %v815 = vadd.f32 %v808, %v813
      %816 = vmax.xlane.f32.xlu0 %v815
      %v817 = vpop.xlane.xlu0 %816
      %v818 = vsub.f32 %v815, %v817
      %v819 = vmul.f32 %v818, 1.442695
      %v820 = vpow.pop %v819
      %821 = vadd.xlane.f32.xlu0 %v820
      %v822 = vpop.xlane.xlu0 %821
      %v823 = vrcp.pop %v822
      %v824 = vmul.f32 %v820, %v823
      %v825 = vmul.f32 %v824, 0.33333334
      %826 = vst [vmem:[#allocation8] sm:$0xff] %v825
      %v827 = vld [vmem:[#allocation2 + $0x8] sm:$0xff]
      %v828 = vadd.f32 %v827, %v813
      %829 = vmax.xlane.f32.xlu0 %v828
      %v830 = vpop.xlane.xlu0 %829
      %v831 = vsub.f32 %v828, %v830
      %v832 = vmul.f32 %v831, 1.442695
      %v833 = vpow.pop %v832
      %834 = vadd.xlane.f32.xlu0 %v833
      %v835 = vpop.xlane.xlu0 %834
      %v836 = vrcp.pop %v835
      %v837 = vmul.f32 %v833, %v836
      %v838 = vmul.f32 %v837, 0.33333334
      %v839 = vld [vmem:[#allocation8] sm:$0xff]
      %v840 = vadd.f32 %v839, %v838
      %841 = vst [vmem:[#allocation8] sm:$0xff] %v840
      %v842 = vld [vmem:[#allocation2 + $0x10] sm:$0xff]
      %v843 = vadd.f32 %v842, %v813
      %844 = vmax.xlane.f32.xlu0 %v843
      %v845 = vpop.xlane.xlu0 %844
      %v846 = vsub.f32 %v843, %v845
      %v847 = vmul.f32 %v846, 1.442695
      %v848 = vpow.pop %v847
      %849 = vadd.xlane.f32.xlu0 %v848
      %v850 = vpop.xlane.xlu0 %849
      %v851 = vrcp.pop %v850
      %v852 = vmul.f32 %v848, %v851
      %v853 = vmul.f32 %v852, 0.33333334
      %v854 = vld [vmem:[#allocation8] sm:$0xff]
      %v855 = vadd.f32 %v854, %v853
      %856 = vst [vmem:[#allocation8] sm:$0xff] %v855
    $region29: #{tpu_custom_call.1} parent=1 // pred_fallthru
      _
    // Predicated region
    $region30: #{tpu_custom_call.1} parent=1 // pred_check
      _
    $region31: #{tpu_custom_call.1} parent=1 // pred_check_branch
      %858 = sbr.rel (0) target = $region33
    $region32: #{tpu_custom_call.1} parent=1 // pred_region
      %s860 = ssub.s32 128, 128
      %861 = vsyncadd [#allocation5], %s860
      %s863 = sshll.u32 [#allocation8], 4
      %s864 = int_to_ptr.vmem [resolvable:$true] %s863
      %866 = dma.vmem_to_hbm [thread:$0]  %s864, 128, %s3, [#allocation5]
    $region33: #{tpu_custom_call.1} parent=1 // pred_fallthru
      _
    // Predicated region
    $region34: #{tpu_custom_call.1} parent=1 // pred_check
      _
    $region35: #{tpu_custom_call.1} parent=1 // pred_check_branch
      %868 = sbr.rel (0) target = $region37
    $region36: #{tpu_custom_call.1} parent=1 // pred_region
      %869 = dma.done [#allocation5], 128
    $region37: #{tpu_custom_call.1} parent=1 // pred_fallthru
      _
    %870 = vsyncpa [#allocation4], 1
    %871 = vsyncpa [#allocation7], 1
    %872 = vsyncpa [#allocation5], 1

</llo_original>
